<compile_context>
chip_gen: v7x
topology: tpu7x:2x2x1
jax: 0.10.0
libtpu: 0.0.40
codegen_flags: <defaults>
</compile_context>

<pallas_src>
import functools
import math

import jax
import jax.numpy as jnp
from jax import lax
from jax.experimental import pallas as pl
from jax.experimental.pallas import tpu as pltpu


def _qkv_attention_kernel(qkv_ref, o_ref, *, matmul_dtype):
    # qkv_ref block: (1, 3, G, C, T);  o_ref block: (1, G, C, T)
    q = qkv_ref[0, 0]          # [G, C, T]
    k = qkv_ref[0, 1]          # [G, C, T]
    v = qkv_ref[0, 2]          # [G, C, T]
    ch = q.shape[1]

    # torch scales both q and k by ch**-0.25; fold scale**2 = 1/sqrt(ch) into q
    # only (exact under the f32 accumulator, half the elementwise work).
    # Scale + transpose in f32 (best-supported transpose path), then cast to
    # the matmul operand dtype.
    q_t = jnp.swapaxes(q.astype(jnp.float32) * (1.0 / math.sqrt(ch)), 1, 2)
    q_t = q_t.astype(matmul_dtype)             # [G, T, C]
    k_mm = k.astype(matmul_dtype)              # [G, C, T]

    # s[g,t,s] = sum_c q_t[g,t,c] * k[g,c,s] -- native [M,K]x[K,N] MXU form,
    # no hidden XLU transpose of a T-wide operand.
    s = lax.dot_general(
        q_t, k_mm,
        dimension_numbers=(((2,), (1,)), ((0,), (0,))),
        preferred_element_type=jnp.float32,
    )                                          # [G, T, T] f32

    # Numerically stable exp in f32; normalization deferred past the 2nd matmul.
    m = jnp.max(s, axis=-1, keepdims=True)     # [G, T, 1]
    e = jnp.exp(s - m)                         # [G, T, T] f32
    denom = jnp.sum(e, axis=-1)                # [G, T]    f32

    # Single cast back to the matmul dtype (mirrors torch's
    # softmax(...).type(weight.dtype); values are in (0, 1]).
    p = e.astype(matmul_dtype)                 # [G, T, T]
    v_mm = v.astype(matmul_dtype)              # [G, C, T]

    # a[g,c,t] = sum_s v[g,c,s] * p[g,t,s]   (flash-style 'bcs,bts->bct' form:
    # last-dim/last-dim contraction -> transposed-weight MXU push, no XLU work)
    a = lax.dot_general(
        v_mm, p,
        dimension_numbers=(((2,), (2,)), ((0,), (0,))),
        preferred_element_type=jnp.float32,
    )                                          # [G, C, T] f32

    # Deferred normalization: exact f32 reciprocal on only G*T elements,
    # broadcast along the C (sublane) axis.
    inv = (1.0 / denom)[:, None, :]            # [G, 1, T]
    o_ref[0] = (a * inv).astype(o_ref.dtype)


def _vmem_limits():
    """(vmem_limit_bytes for the compiler, block-picker budget) per generation."""
    vmem_cap = 64 * 1024 * 1024  # conservative fallback (v7x per-TC capacity)
    try:
        info = pltpu.get_tpu_info()
        vmem_cap = int(getattr(info, "vmem_capacity_bytes", vmem_cap))
    except Exception:
        pass
    # Leave headroom for compiler temporaries; cap so v5e/v6e (128 MiB) get a
    # generously raised scoped limit while v7x (64 MiB) stays safe.
    vmem_limit = min((vmem_cap * 3) // 4, 100 * 1024 * 1024)
    budget = (vmem_limit * 4) // 5
    return vmem_limit, budget


def _per_head_vmem_bytes(ch, length, in_itemsize, mm_itemsize):
    """Conservative per-head VMEM footprint of one grid step."""
    io = 2 * (3 + 1) * ch * length * in_itemsize          # double-buffered qkv + out blocks
    tsq = length * length
    scores = 2 * tsq * 4 + tsq * mm_itemsize               # s, e (f32) + cast copy
    small = 3 * ch * length * 4 + 2 * ch * length * mm_itemsize + 8 * length * 4
    return io + scores + small


def _pick_heads_per_block(bs, n_heads, per_head, budget):
    g = max(1, min(n_heads, budget // max(per_head, 1)))
    # Keep at least 2 grid steps when possible so both v7x TensorCores get work.
    if bs == 1 and n_heads >= 2:
        g = min(g, n_heads // 2)
    g = max(1, g)
    while n_heads % g:
        g -= 1
    return g


def _reference_qkv_attention(qkv: jax.Array, n_heads: int) -> jax.Array:
    """Pure-JAX reference mirroring the PyTorch code (HIGHEST precision matmuls)."""
    bs, width, length = qkv.shape
    ch = width // (3 * n_heads)
    q, k, v = jnp.split(qkv, 3, axis=1)
    q = q.reshape(bs * n_heads, ch, length)
    k = k.reshape(bs * n_heads, ch, length)
    v = v.reshape(bs * n_heads, ch, length)
    scale = 1.0 / math.sqrt(math.sqrt(ch))
    weight = jnp.einsum("bct,bcs->bts", q * scale, k * scale,
                        precision=lax.Precision.HIGHEST)
    weight = jax.nn.softmax(weight.astype(jnp.float32), axis=-1).astype(weight.dtype)
    a = jnp.einsum("bts,bcs->bct", weight, v, precision=lax.Precision.HIGHEST)
    return a.reshape(bs, -1, length)


def qkv_attention(qkv: jax.Array, n_heads: int, *, heads_per_block=None,
                  matmul_dtype=None) -> jax.Array:
    """Pallas equivalent of QKVAttention.forward.

    qkv: [N, 3*H*C, T]  ->  returns [N, H*C, T]

    matmul_dtype: operand dtype for the two MXU contractions (accumulation is
      always f32). None = input dtype (semantics-preserving). Pass
      jnp.bfloat16 for the fast mixed-precision path on v6e/v7x.
    """
    bs, width, length = qkv.shape
    assert width % (3 * n_heads) == 0
    ch = width // (3 * n_heads)

    if matmul_dtype is None:
        matmul_dtype = qkv.dtype
    matmul_dtype = jnp.dtype(matmul_dtype)

    vmem_limit, budget = _vmem_limits()
    per_head = _per_head_vmem_bytes(ch, length, qkv.dtype.itemsize,
                                    matmul_dtype.itemsize)
    if per_head > budget:
        # Monolithic T x T weight would spill / fail (notably on v7x's 64 MiB VMEM).
        # TODO(synk): flash-style KV-tiled online-softmax Pallas path for large T.
        return _reference_qkv_attention(qkv, n_heads)

    # Free (layout-preserving) view: width axis is ordered q|k|v, each chunk is
    # head-major then channel -> [N, 3, H, C, T]. No HBM copies are made.
    qkv5 = qkv.reshape(bs, 3, n_heads, ch, length)

    if heads_per_block is None:
        heads_per_block = _pick_heads_per_block(bs, n_heads, per_head, budget)
    g = heads_per_block
    assert n_heads % g == 0
    grid = (bs, n_heads // g)

    # One DMA per grid step: the whole (q|k|v) slab for this head group.
    in_spec = pl.BlockSpec((1, 3, g, ch, length), lambda n, h: (n, 0, h, 0, 0))
    out_spec = pl.BlockSpec((1, g, ch, length), lambda n, h: (n, h, 0, 0))

    bh = bs * n_heads
    cost = pl.CostEstimate(
        flops=4 * bh * ch * length * length,          # two matmuls
        transcendentals=bh * length * length,         # exp
        bytes_accessed=4 * bh * ch * length * qkv.dtype.itemsize,
    )

    kernel = functools.partial(_qkv_attention_kernel, matmul_dtype=matmul_dtype)

    out = pl.pallas_call(
        kernel,
        out_shape=jax.ShapeDtypeStruct((bs, n_heads, ch, length), qkv.dtype),
        grid=grid,
        in_specs=[in_spec],
        out_specs=out_spec,
        compiler_params=pltpu.CompilerParams(
            dimension_semantics=("parallel", "parallel"),
            vmem_limit_bytes=vmem_limit,
        ),
        cost_estimate=cost,
    )(qkv5)

    return out.reshape(bs, n_heads * ch, length)


if __name__ == "__main__":
    # QKVAttention has no learnable parameters; only the input tensor is needed.
    n_heads = 2
    bs = 2
    ch = 64
    length = 128                       # lane-dense output (>= 128) for the test
    width = 3 * n_heads * ch           # 384

    key = jax.random.PRNGKey(0)
    qkv = jax.random.normal(key, (bs, width, length), dtype=jnp.float32)

    ref = _reference_qkv_attention(qkv, n_heads)

    # Default path: operands stay in the input dtype (torch-equivalent math).
    out = jax.block_until_ready(qkv_attention(qkv, n_heads))
    assert out.shape == (bs, n_heads * ch, length), out.shape
    assert jnp.allclose(out, ref, atol=2e-3, rtol=2e-3), "mismatch vs reference (f32 path)"

    # Fast path: bf16 MXU operands with f32 accumulation (opt-in mixed precision).
    out_bf16 = jax.block_until_ready(
        qkv_attention(qkv, n_heads, matmul_dtype=jnp.bfloat16))
    assert out_bf16.shape == (bs, n_heads * ch, length), out_bf16.shape
    assert jnp.allclose(out_bf16, ref, atol=1e-1, rtol=1e-1), "mismatch vs reference (bf16 path)"

    print("KERNEL_OK")
</pallas_src>

<mosaic_0001>
module attributes {stable_mosaic.version = 11 : i64} {
  func.func @_qkv_attention_kernel(%arg0: i32, %arg1: i32, %arg2: memref<1x3x2x64x128xf32, #tpu.memory_space<vmem>>, %arg3: memref<1x2x64x128xf32, #tpu.memory_space<vmem>>) attributes {dimension_semantics = [#tpu.dimension_semantics<parallel>, #tpu.dimension_semantics<parallel>], iteration_bounds = array<i64: 2, 1>, scalar_prefetch = 0 : i64, scratch_operands = 0 : i64, tpu.core_type = #tpu.core_type<tc>, window_params = [{transform_indices = @transform_0, window_bounds = array<i64: 1, 3, 2, 64, 128>}, {transform_indices = @transform_1, window_bounds = array<i64: 1, 2, 64, 128>}]} {
    %c0 = arith.constant 0 : index
    %c0_0 = arith.constant 0 : index
    %c0_1 = arith.constant 0 : index
    %c0_2 = arith.constant 0 : index
    %c0_3 = arith.constant 0 : index
    %0 = vector.load %arg2[%c0, %c0_0, %c0_1, %c0_2, %c0_3] : memref<1x3x2x64x128xf32, #tpu.memory_space<vmem>>, vector<1x1x2x64x128xf32>
    %1 = vector.shape_cast %0 : vector<1x1x2x64x128xf32> to vector<2x64x128xf32>
    %c0_4 = arith.constant 0 : index
    %c1 = arith.constant 1 : index
    %c0_5 = arith.constant 0 : index
    %c0_6 = arith.constant 0 : index
    %c0_7 = arith.constant 0 : index
    %2 = vector.load %arg2[%c0_4, %c1, %c0_5, %c0_6, %c0_7] : memref<1x3x2x64x128xf32, #tpu.memory_space<vmem>>, vector<1x1x2x64x128xf32>
    %3 = vector.shape_cast %2 : vector<1x1x2x64x128xf32> to vector<2x64x128xf32>
    %c0_8 = arith.constant 0 : index
    %c2 = arith.constant 2 : index
    %c0_9 = arith.constant 0 : index
    %c0_10 = arith.constant 0 : index
    %c0_11 = arith.constant 0 : index
    %4 = vector.load %arg2[%c0_8, %c2, %c0_9, %c0_10, %c0_11] : memref<1x3x2x64x128xf32, #tpu.memory_space<vmem>>, vector<1x1x2x64x128xf32>
    %5 = vector.shape_cast %4 : vector<1x1x2x64x128xf32> to vector<2x64x128xf32>
    %cst = arith.constant 1.250000e-01 : f32
    %6 = vector.broadcast %cst : f32 to vector<2x64x128xf32>
    %7 = arith.mulf %1, %6 : vector<2x64x128xf32>
    %8 = tpu.transpose %7, [0, 2, 1] : vector<2x64x128xf32> -> vector<2x128x64xf32>
    %cst_12 = arith.constant dense<0.000000e+00> : vector<2x128x128xf32>
    %9 = tpu.matmul %8, %3, %cst_12 {dimension_numbers = #tpu.dot_dimension_numbers<[2], [1], [1], [2], [0, 0, 0, 1, 1, 2], [0], [0]>} : vector<2x128x64xf32>, vector<2x64x128xf32>, vector<2x128x128xf32> -> vector<2x128x128xf32>
    %cst_13 = arith.constant dense<0xFF800000> : vector<2x128xf32>
    %10 = vector.multi_reduction <maximumf>, %9, %cst_13 [2] : vector<2x128x128xf32> to vector<2x128xf32>
    %11 = vector.shape_cast %10 : vector<2x128xf32> to vector<2x128x1xf32>
    %12 = vector.broadcast %11 : vector<2x128x1xf32> to vector<2x128x128xf32>
    %13 = arith.subf %9, %12 : vector<2x128x128xf32>
    %14 = math.exp %13 : vector<2x128x128xf32>
    %cst_14 = arith.constant dense<0.000000e+00> : vector<2x128xf32>
    %15 = vector.multi_reduction <add>, %14, %cst_14 [2] : vector<2x128x128xf32> to vector<2x128xf32>
    %cst_15 = arith.constant dense<0.000000e+00> : vector<2x64x128xf32>
    %16 = tpu.matmul %5, %14, %cst_15 {dimension_numbers = #tpu.dot_dimension_numbers<[2], [2], [1], [1], [0, 0, 0, 1, 1, 1], [0], [0]>} : vector<2x64x128xf32>, vector<2x128x128xf32>, vector<2x64x128xf32> -> vector<2x64x128xf32>
    %cst_16 = arith.constant 1.000000e+00 : f32
    %17 = vector.broadcast %cst_16 : f32 to vector<2x128xf32>
    %18 = arith.divf %17, %15 : vector<2x128xf32>
    %19 = vector.shape_cast %18 : vector<2x128xf32> to vector<2x1x128xf32>
    %20 = vector.broadcast %19 : vector<2x1x128xf32> to vector<2x64x128xf32>
    %21 = arith.mulf %16, %20 : vector<2x64x128xf32>
    %c0_17 = arith.constant 0 : index
    %c0_18 = arith.constant 0 : index
    %c0_19 = arith.constant 0 : index
    %c0_20 = arith.constant 0 : index
    %22 = vector.load %arg3[%c0_17, %c0_18, %c0_19, %c0_20] : memref<1x2x64x128xf32, #tpu.memory_space<vmem>>, vector<1x2x64x128xf32>
    %23 = vector.shape_cast %22 : vector<1x2x64x128xf32> to vector<2x64x128xf32>
    %24 = vector.shape_cast %21 : vector<2x64x128xf32> to vector<1x2x64x128xf32>
    tpu.vector_store %arg3[%c0_17, %c0_18, %c0_19, %c0_20], %24 {strides = array<i32>} : memref<1x2x64x128xf32, #tpu.memory_space<vmem>>, vector<1x2x64x128xf32>,
    return
  }
  func.func @transform_0(%arg0: i32, %arg1: i32) -> (i32, i32, i32, i32, i32) {
    %c0_i32 = arith.constant 0 : i32
    %c0_i32_0 = arith.constant 0 : i32
    %c0_i32_1 = arith.constant 0 : i32
    %c0_i32_2 = arith.constant 0 : i32
    return %arg0, %c0_i32, %arg1, %c0_i32_0, %c0_i32_1 : i32, i32, i32, i32, i32
  }
  func.func @transform_1(%arg0: i32, %arg1: i32) -> (i32, i32, i32, i32) {
    %c0_i32 = arith.constant 0 : i32
    %c0_i32_0 = arith.constant 0 : i32
    %c0_i32_1 = arith.constant 0 : i32
    return %arg0, %arg1, %c0_i32, %c0_i32_0 : i32, i32, i32, i32
  }
}

</mosaic_0001>

<llo_original>
// kernel: tpu_custom_call.1
$region0: #{tpu_custom_call.1}
  #allocation0 [shape = 'u32[]', space=smem, size = 0x4, offset = 0x4, fixed_abs, tag = 'smem constant byte address 0x4 - core index']
  #allocation1 [shape = 'u32[144,128]{1,0:T(1,128)}', space=vmem, size = 0x12000, scoped, tag = 'internal scratch']
  %s0 = inlined_call_operand.hbm [shape: f32[2,3,2,64,128], index: 0, kind: input, shape index: {}]
  %s1 = inlined_call_operand.hbm [shape: f32[2,2,64,128], index: 1, kind: output, shape index: {}]
  %s2 = sld [smem:[#allocation0]]
  $region41: #{tpu_custom_call.1} parent=0
    _
  %s4 = ssub.s32 1, %s2
  %s5 = scalar_select 0, %s4, %s2
  $region1: #{tpu_custom_call.1} parent=0
    #allocation2 [shape = 'u8[393216]{0}', space=vmem, size = 0x60000, scoped, tag = 'input window, operand 0']
    #allocation3 [shape = 's32[2]{0}', space=sflag, size = 0x8, scoped, tag = 'scoped memory for tpu_custom_call.1']
    #allocation4 [shape = 's32[2]{0}', space=sflag, size = 0x8, scoped, tag = 'scoped memory for tpu_custom_call.1']
    #allocation5 [shape = 'u8[131072]{0}', space=vmem, size = 0x20000, scoped, tag = 'output window, operand 0']
    %6 = vsyncpa [#allocation3], 0
    %s7 = scalar_lea.sflag [#allocation3], 1
    %8 = vsyncpa %s7, 0
    %9 = vsyncpa [#allocation4], 0
    %s10 = scalar_lea.sflag [#allocation4], 1
    %11 = vsyncpa %s10, 0
    loop: start=0, step=1, limit=4
    $region2: #{tpu_custom_call.1} parent=1 // loop_pre_header
      _
    $region3: #{tpu_custom_call.1} parent=1 // loop_header
      %s13 = sphi 0, %s17
      %p14 = scmp.ge.s32.totalorder %s13, 4
      %s20 = sphi 0, %s32
      %s21 = sphi 0, %s28
      %s22 = sphi 0, %s20
      %s23 = sphi 0, %s21
      %s24 = sphi 0, %s22
      %s25 = sphi 0, %s23
      %s37 = sphi 0, %s39
      %s40 = sphi 0, %s37
      %s41 = sphi 0, %s40
      %s57 = sphi 0, %s41
      %s65 = sphi 0, %s67
      %s68 = sphi 0, %s65
      %s69 = sphi 0, %s68
      %s85 = sphi 0, %s69
    $region4: #{tpu_custom_call.1} parent=1 // loop_header_branch
      %16 = sbr.rel (%p14) target = $region8
    $region5: #{tpu_custom_call.1} parent=1 // loop_body
      %s18 = ssub.s32 %s13, 1
      %s19 = ssub.s32 %s13, 2
      %s26 = sadd.s32 1, %s21
      %p27 = scmp.ge.s32.totalorder %s26, 1
      %s28 = scalar_select %p27, 0, %s26
      %s29 = sadd.s32 1, %s20
      %s30 = scalar_select %p27, %s29, %s20
      %p31 = scmp.ge.s32.totalorder %s30, 2
      %s32 = scalar_select %p31, 0, %s30
      %s33 = ssub.s32 %s20, %s32
      %s34 = ssub.s32 %s21, %s28
      %s35 = sor.u32 %s33, %s34
      %p36 = scmp.eq.s32.totalorder %s35, 0
      %s38 = sadd.s32 %s37, 1
      %s39 = scalar_select %p36, %s37, %s38
      %p42 = pneg %p36
      %p43 = scmp.eq.s32.totalorder %s13, 1
      %p44 = por %p42, %p43
      %p45 = scmp.ne.s32.totalorder %s37, %s40
      %p46 = scmp.eq.s32.totalorder %s13, 0
      %p47 = por %p45, %p46
      %p48 = scmp.ne.s32.totalorder %s37, %s40
      %p49 = scmp.eq.s32.totalorder %s18, 1
      %p50 = por %p48, %p49
      %p51 = scmp.ne.s32.totalorder %s40, %s41
      %p52 = scmp.eq.s32.totalorder %s18, 0
      %p53 = por %p51, %p52
      %p54 = scmp.ne.s32.totalorder %s40, %s41
      %p55 = scmp.eq.s32.totalorder %s19, 1
      %p56 = por %p54, %p55
      %p58 = scmp.ne.s32.totalorder %s41, %s57
      %p59 = scmp.eq.s32.totalorder %s19, 0
      %p60 = por %p58, %p59
      %s61 = ssub.s32 %s20, %s32
      %s62 = ssub.s32 %s21, %s28
      %s63 = sor.u32 %s61, %s62
      %p64 = scmp.eq.s32.totalorder %s63, 0
      %s66 = sadd.s32 %s65, 1
      %s67 = scalar_select %p64, %s65, %s66
      %p70 = pneg %p64
      %p71 = scmp.eq.s32.totalorder %s13, 1
      %p72 = por %p70, %p71
      %p73 = scmp.ne.s32.totalorder %s65, %s68
      %p74 = scmp.eq.s32.totalorder %s13, 0
      %p75 = por %p73, %p74
      %p76 = scmp.ne.s32.totalorder %s65, %s68
      %p77 = scmp.eq.s32.totalorder %s18, 1
      %p78 = por %p76, %p77
      %p79 = scmp.ne.s32.totalorder %s68, %s69
      %p80 = scmp.eq.s32.totalorder %s18, 0
      %p81 = por %p79, %p80
      %p82 = scmp.ne.s32.totalorder %s68, %s69
      %p83 = scmp.eq.s32.totalorder %s19, 1
      %p84 = por %p82, %p83
      %p86 = scmp.ne.s32.totalorder %s69, %s85
      %p87 = scmp.eq.s32.totalorder %s19, 0
      %p88 = por %p86, %p87
      %p89 = scmp.le.s32.totalorder 1, %s13
      %p90 = scmp.lt.s32.totalorder %s13, 3
      %p91 = pnand %p89, %p90
      %p92 = pneg %p91
      // Predicated region
      $region9: #{tpu_custom_call.1} parent=5 // pred_check
        _
      $region10: #{tpu_custom_call.1} parent=5 // pred_check_branch
        %94 = sbr.rel (%p91) target = $region12
      $region11: #{tpu_custom_call.1} parent=5 // pred_region
        %s95 = ssub.s32 %s13, 1
      $region12: #{tpu_custom_call.1} parent=5 // pred_fallthru
        _
      %p96 = scmp.lt.s32.totalorder %s13, 2
      // Predicated region
      $region13: #{tpu_custom_call.1} parent=5 // pred_check
        %p97 = pneg %p96
      $region14: #{tpu_custom_call.1} parent=5 // pred_check_branch
        %99 = sbr.rel (%p97) target = $region16
      $region15: #{tpu_custom_call.1} parent=5 // pred_region
        // Predicated region
        $region17: #{tpu_custom_call.1} parent=15 // pred_check
          %p100 = pneg %p47
        $region18: #{tpu_custom_call.1} parent=15 // pred_check_branch
          %102 = sbr.rel (%p100) target = $region20
        $region19: #{tpu_custom_call.1} parent=15 // pred_region
          %s103 = sand.u32 %s37, 1
          %s104 = scalar_lea.sflag [#allocation3], %s103
          %s105 = sand.u32 %s37, 1
          %s106 = smul.addr %s105, 384
          %s107 = scalar_lea.vmem [#allocation2], %s106
          %s108 = smul.u32 2, %s21
          %s110 = ssub.s32 6144, 6144
          %111 = vsyncadd %s104, %s110
          %s112 = smul.addr %s108, 8
          %s113 = smul.addr %s20, 48
          %s114 = sadd.s32 %s112, %s113
          %s115 = smul.addr %s114, 128
          %s116 = scalar_lea.hbm %s0, %s115
          %s117 = sshll.u32 %s107, 4
          %s118 = int_to_ptr.vmem [resolvable:$true] %s117
          %123 = dma.hbm_to_vmem [thread:$0]  %s116, 6144, %s118, %s104, 128, 128, 8
        $region20: #{tpu_custom_call.1} parent=15 // pred_fallthru
          _
      $region16: #{tpu_custom_call.1} parent=5 // pred_fallthru
        _
      %p124 = scmp.le.s32.totalorder 1, %s13
      %p125 = scmp.lt.s32.totalorder %s13, 3
      %p126 = pnand %p124, %p125
      %p127 = pneg %p126
      // Predicated region
      $region21: #{tpu_custom_call.1} parent=5 // pred_check
        _
      $region22: #{tpu_custom_call.1} parent=5 // pred_check_branch
        %129 = sbr.rel (%p126) target = $region24
      $region23: #{tpu_custom_call.1} parent=5 // pred_region
        %s130 = ssub.s32 %s13, 1
        %s131 = sand.u32 %s40, 1
        %s132 = scalar_lea.sflag [#allocation3], %s131
        %s133 = sand.u32 %s40, 1
        %s134 = smul.addr %s133, 384
        %s135 = scalar_lea.vmem [#allocation2], %s134
        // Predicated region
        $region25: #{tpu_custom_call.1} parent=23 // pred_check
          %p136 = pneg %p53
        $region26: #{tpu_custom_call.1} parent=23 // pred_check_branch
          %138 = sbr.rel (%p136) target = $region28
        $region27: #{tpu_custom_call.1} parent=23 // pred_region
          %139 = dma.done %s132, 6144
        $region28: #{tpu_custom_call.1} parent=23 // pred_fallthru
          _
        %s140 = sand.u32 %s40, 1
        %s141 = scalar_lea.sflag [#allocation3], %s140
        %s142 = sand.u32 %s40, 1
        %s143 = smul.addr %s142, 384
        %s144 = scalar_lea.vmem [#allocation2], %s143
        %p145 = pneg %p53
        %p146 = pneg %p50
        %p147 = pneg %p81
        %p148 = pneg %p78
        %s149 = sand.u32 %s68, 1
        %s150 = scalar_lea.sflag [#allocation4], %s149
        %s151 = sand.u32 %s68, 1
        %s152 = smul.addr %s151, 128
        %s153 = scalar_lea.vmem [#allocation5], %s152
        %s154 = smul.u32 2, %s23
        %s155 = smul.u32 2, %s23
        %v156 = vld [vmem:[%s135] sm:$0xff]
        %v157 = vld [vmem:[%s135 + $0x8] sm:$0xff]
        %v158 = vld [vmem:[%s135 + $0x10] sm:$0xff]
        %v159 = vld [vmem:[%s135 + $0x18] sm:$0xff]
        %v160 = vld [vmem:[%s135 + $0x20] sm:$0xff]
        %v161 = vld [vmem:[%s135 + $0x28] sm:$0xff]
        %v162 = vld [vmem:[%s135 + $0x30] sm:$0xff]
        %v163 = vld [vmem:[%s135 + $0x38] sm:$0xff]
        %v164 = vld [vmem:[%s135 + $0x40] sm:$0xff]
        %v165 = vld [vmem:[%s135 + $0x48] sm:$0xff]
        %v166 = vld [vmem:[%s135 + $0x50] sm:$0xff]
        %v167 = vld [vmem:[%s135 + $0x58] sm:$0xff]
        %v168 = vld [vmem:[%s135 + $0x60] sm:$0xff]
        %v169 = vld [vmem:[%s135 + $0x68] sm:$0xff]
        %v170 = vld [vmem:[%s135 + $0x70] sm:$0xff]
        %v171 = vld [vmem:[%s135 + $0x78] sm:$0xff]
        %s172 = scalar_lea.vmem %s135, 128 [#allocation2]
        %v173 = vld [vmem:[%s172] sm:$0xff]
        %v174 = vld [vmem:[%s172 + $0x8] sm:$0xff]
        %v175 = vld [vmem:[%s172 + $0x10] sm:$0xff]
        %v176 = vld [vmem:[%s172 + $0x18] sm:$0xff]
        %v177 = vld [vmem:[%s172 + $0x20] sm:$0xff]
        %v178 = vld [vmem:[%s172 + $0x28] sm:$0xff]
        %v179 = vld [vmem:[%s172 + $0x30] sm:$0xff]
        %v180 = vld [vmem:[%s172 + $0x38] sm:$0xff]
        %v181 = vld [vmem:[%s172 + $0x40] sm:$0xff]
        %v182 = vld [vmem:[%s172 + $0x48] sm:$0xff]
        %v183 = vld [vmem:[%s172 + $0x50] sm:$0xff]
        %v184 = vld [vmem:[%s172 + $0x58] sm:$0xff]
        %v185 = vld [vmem:[%s172 + $0x60] sm:$0xff]
        %v186 = vld [vmem:[%s172 + $0x68] sm:$0xff]
        %v187 = vld [vmem:[%s172 + $0x70] sm:$0xff]
        %v188 = vld [vmem:[%s172 + $0x78] sm:$0xff]
        %s189 = scalar_lea.vmem %s135, 256 [#allocation2]
        %v190 = vld [vmem:[%s189] sm:$0xff]
        %v191 = vld [vmem:[%s189 + $0x8] sm:$0xff]
        %v192 = vld [vmem:[%s189 + $0x10] sm:$0xff]
        %v193 = vld [vmem:[%s189 + $0x18] sm:$0xff]
        %v194 = vld [vmem:[%s189 + $0x20] sm:$0xff]
        %v195 = vld [vmem:[%s189 + $0x28] sm:$0xff]
        %v196 = vld [vmem:[%s189 + $0x30] sm:$0xff]
        %v197 = vld [vmem:[%s189 + $0x38] sm:$0xff]
        %v198 = vld [vmem:[%s189 + $0x40] sm:$0xff]
        %v199 = vld [vmem:[%s189 + $0x48] sm:$0xff]
        %v200 = vld [vmem:[%s189 + $0x50] sm:$0xff]
        %v201 = vld [vmem:[%s189 + $0x58] sm:$0xff]
        %v202 = vld [vmem:[%s189 + $0x60] sm:$0xff]
        %v203 = vld [vmem:[%s189 + $0x68] sm:$0xff]
        %v204 = vld [vmem:[%s189 + $0x70] sm:$0xff]
        %v205 = vld [vmem:[%s189 + $0x78] sm:$0xff]
        %v206 = vmul.f32 %v156, 0.125
        %v207 = vmul.f32 %v157, 0.125
        %v208 = vmul.f32 %v158, 0.125
        %v209 = vmul.f32 %v159, 0.125
        %v210 = vmul.f32 %v160, 0.125
        %v211 = vmul.f32 %v161, 0.125
        %v212 = vmul.f32 %v162, 0.125
        %v213 = vmul.f32 %v163, 0.125
        %v214 = vmul.f32 %v164, 0.125
        %v215 = vmul.f32 %v165, 0.125
        %v216 = vmul.f32 %v166, 0.125
        %v217 = vmul.f32 %v167, 0.125
        %v218 = vmul.f32 %v168, 0.125
        %v219 = vmul.f32 %v169, 0.125
        %v220 = vmul.f32 %v170, 0.125
        %v221 = vmul.f32 %v171, 0.125
        %222 = vxpose.xlu0.b32.start [1/16] %v206, 128
        %223 = vxpose.xlu0.b32.cont [2/16] %v207, 128
        %224 = vxpose.xlu0.b32.cont [3/16] %v208, 128
        %225 = vxpose.xlu0.b32.cont [4/16] %v209, 128
        %226 = vxpose.xlu0.b32.cont [5/16] %v210, 128
        %227 = vxpose.xlu0.b32.cont [6/16] %v211, 128
        %228 = vxpose.xlu0.b32.cont [7/16] %v212, 128
        %229 = vxpose.xlu0.b32.cont [8/16] %v213, 128
        %230 = vxpose.xlu0.b32.cont [9/16] 0.0, 128
        %231 = vxpose.xlu0.b32.cont [10/16] 0.0, 128
        %232 = vxpose.xlu0.b32.cont [11/16] 0.0, 128
        %233 = vxpose.xlu0.b32.cont [12/16] 0.0, 128
        %234 = vxpose.xlu0.b32.cont [13/16] 0.0, 128
        %235 = vxpose.xlu0.b32.cont [14/16] 0.0, 128
        %236 = vxpose.xlu0.b32.cont [15/16] 0.0, 128
        %237 = vxpose.xlu0.b32.end [16/16] 0.0, 128
        %v238 = vpop.trf.xlu0
        %v239 = vpop.trf.xlu0
        %v240 = vpop.trf.xlu0
        %v241 = vpop.trf.xlu0
        %v242 = vpop.trf.xlu0
        %v243 = vpop.trf.xlu0
        %v244 = vpop.trf.xlu0
        %v245 = vpop.trf.xlu0
        %v246 = vpop.trf.xlu0
        %v247 = vpop.trf.xlu0
        %v248 = vpop.trf.xlu0
        %v249 = vpop.trf.xlu0
        %v250 = vpop.trf.xlu0
        %v251 = vpop.trf.xlu0
        %v252 = vpop.trf.xlu0
        %v253 = vpop.trf.xlu0
        %254 = vxpose.xlu0.b32.start [1/16] %v214, 128
        %255 = vxpose.xlu0.b32.cont [2/16] %v215, 128
        %256 = vxpose.xlu0.b32.cont [3/16] %v216, 128
        %257 = vxpose.xlu0.b32.cont [4/16] %v217, 128
        %258 = vxpose.xlu0.b32.cont [5/16] %v218, 128
        %259 = vxpose.xlu0.b32.cont [6/16] %v219, 128
        %260 = vxpose.xlu0.b32.cont [7/16] %v220, 128
        %261 = vxpose.xlu0.b32.cont [8/16] %v221, 128
        %262 = vxpose.xlu0.b32.cont [9/16] 0.0, 128
        %263 = vxpose.xlu0.b32.cont [10/16] 0.0, 128
        %264 = vxpose.xlu0.b32.cont [11/16] 0.0, 128
        %265 = vxpose.xlu0.b32.cont [12/16] 0.0, 128
        %266 = vxpose.xlu0.b32.cont [13/16] 0.0, 128
        %267 = vxpose.xlu0.b32.cont [14/16] 0.0, 128
        %268 = vxpose.xlu0.b32.cont [15/16] 0.0, 128
        %269 = vxpose.xlu0.b32.end [16/16] 0.0, 128
        %v270 = vpop.trf.xlu0
        %v271 = vpop.trf.xlu0
        %v272 = vpop.trf.xlu0
        %v273 = vpop.trf.xlu0
        %v274 = vpop.trf.xlu0
        %v275 = vpop.trf.xlu0
        %v276 = vpop.trf.xlu0
        %v277 = vpop.trf.xlu0
        %v278 = vpop.trf.xlu0
        %v279 = vpop.trf.xlu0
        %v280 = vpop.trf.xlu0
        %v281 = vpop.trf.xlu0
        %v282 = vpop.trf.xlu0
        %v283 = vpop.trf.xlu0
        %v284 = vpop.trf.xlu0
        %v285 = vpop.trf.xlu0
        %vm286 = vcmask 523264
        %v288 = vsel %vm286, %v238, 0
        %v291 = vsel %vm286, %v239, 0
        %v294 = vsel %vm286, %v240, 0
        %v297 = vsel %vm286, %v241, 0
        %v300 = vsel %vm286, %v242, 0
        %v303 = vsel %vm286, %v243, 0
        %v306 = vsel %vm286, %v244, 0
        %v309 = vsel %vm286, %v245, 0
        %v312 = vsel %vm286, %v246, 0
        %v315 = vsel %vm286, %v247, 0
        %v318 = vsel %vm286, %v248, 0
        %v321 = vsel %vm286, %v249, 0
        %v324 = vsel %vm286, %v250, 0
        %v327 = vsel %vm286, %v251, 0
        %v330 = vsel %vm286, %v252, 0
        %v333 = vsel %vm286, %v253, 0
        %335 = vmatprep.subr.mxu0 0.0
        %336 = vmatpush1.msra.mxu0 %v173
        %337 = vmatprep.subr.mxu0 0.0
        %338 = vmatpush1.msra.mxu0 %v174
        %339 = vmatprep.subr.mxu0 0.0
        %340 = vmatpush1.msra.mxu0 %v175
        %341 = vmatprep.subr.mxu0 0.0
        %342 = vmatpush1.msra.mxu0 %v176
        %343 = vmatprep.subr.mxu0 0.0
        %344 = vmatpush1.msra.mxu0 %v177
        %345 = vmatprep.subr.mxu0 0.0
        %346 = vmatpush1.msra.mxu0 %v178
        %347 = vmatprep.subr.mxu0 0.0
        %348 = vmatpush1.msra.mxu0 %v179
        %349 = vmatprep.subr.mxu0 0.0
        %350 = vmatpush1.msra.mxu0 %v180
        %351 = vmatprep.subr.mxu0 0.0
        %352 = vmatpush1.msra.mxu0 0.0
        %353 = vmatprep.subr.mxu0 0.0
        %354 = vmatpush1.msra.mxu0 0.0
        %355 = vmatprep.subr.mxu0 0.0
        %356 = vmatpush1.msra.mxu0 0.0
        %357 = vmatprep.subr.mxu0 0.0
        %358 = vmatpush1.msra.mxu0 0.0
        %359 = vmatprep.subr.mxu0 0.0
        %360 = vmatpush1.msra.mxu0 0.0
        %361 = vmatprep.subr.mxu0 0.0
        %362 = vmatpush1.msra.mxu0 0.0
        %363 = vmatprep.subr.mxu0 0.0
        %364 = vmatpush1.msra.mxu0 0.0
        %365 = vmatprep.subr.mxu0 0.0
        %366 = vmatpush1.msra.mxu0 0.0
        %367 = vmatprep.subr.mxu0 0.0
        %368 = vmatpush1.msra.mxu0 0.0
        %369 = vmatprep.subr.mxu0 0.0
        %370 = vmatpush1.msra.mxu0 0.0
        %371 = vmatprep.subr.mxu0 0.0
        %372 = vmatpush1.msra.mxu0 0.0
        %373 = vmatprep.subr.mxu0 0.0
        %374 = vmatpush1.msra.mxu0 0.0
        %375 = vmatprep.subr.mxu0 0.0
        %376 = vmatpush1.msra.mxu0 0.0
        %377 = vmatprep.subr.mxu0 0.0
        %378 = vmatpush1.msra.mxu0 0.0
        %379 = vmatprep.subr.mxu0 0.0
        %380 = vmatpush1.msra.mxu0 0.0
        %381 = vmatprep.subr.mxu0 0.0
        %382 = vmatpush1.msra.mxu0 0.0
        %383 = vmatprep.subr.mxu0 0.0
        %384 = vmatpush1.msra.mxu0 0.0
        %385 = vmatprep.subr.mxu0 0.0
        %386 = vmatpush1.msra.mxu0 0.0
        %387 = vmatprep.subr.mxu0 0.0
        %388 = vmatpush1.msra.mxu0 0.0
        %389 = vmatprep.subr.mxu0 0.0
        %390 = vmatpush1.msra.mxu0 0.0
        %391 = vmatprep.subr.mxu0 0.0
        %392 = vmatpush1.msra.mxu0 0.0
        %393 = vmatprep.subr.mxu0 0.0
        %394 = vmatpush1.msra.mxu0 0.0
        %395 = vmatprep.subr.mxu0 0.0
        %396 = vmatpush1.msra.mxu0 0.0
        %397 = vmatprep.subr.mxu0 0.0
        %398 = vmatpush1.msra.mxu0 0.0
        %399 = vmatprep.mubr.f32.mxu0 0.0
        %400 = vmatmul.mubr.f32.gmra.mrb[0].mxu0 %v288
        %v401 = vpop.f32.mrb[0].mxu0
        %v402 = vadd.f32 0.0, %v401
        %v403 = vpop.f32.mrb[0].mxu0
        %404 = vmatprep.mubr.f32.mxu0 0.0
        %405 = vmatmul.mubr.f32.gmra.mrb[0].mxu0 %v291
        %v406 = vpop.f32.mrb[0].mxu0
        %v407 = vadd.f32 0.0, %v406
        %v408 = vpop.f32.mrb[0].mxu0
        %409 = vmatprep.mubr.f32.mxu0 0.0
        %410 = vmatmul.mubr.f32.gmra.mrb[0].mxu0 %v294
        %v411 = vpop.f32.mrb[0].mxu0
        %v412 = vadd.f32 0.0, %v411
        %v413 = vpop.f32.mrb[0].mxu0
        %414 = vmatprep.mubr.f32.mxu0 0.0
        %415 = vmatmul.mubr.f32.gmra.mrb[0].mxu0 %v297
        %v416 = vpop.f32.mrb[0].mxu0
        %v417 = vadd.f32 0.0, %v416
        %v418 = vpop.f32.mrb[0].mxu0
        %419 = vmatprep.mubr.f32.mxu0 0.0
        %420 = vmatmul.mubr.f32.gmra.mrb[0].mxu0 %v300
        %v421 = vpop.f32.mrb[0].mxu0
        %v422 = vadd.f32 0.0, %v421
        %v423 = vpop.f32.mrb[0].mxu0
        %424 = vmatprep.mubr.f32.mxu0 0.0
        %425 = vmatmul.mubr.f32.gmra.mrb[0].mxu0 %v303
        %v426 = vpop.f32.mrb[0].mxu0
        %v427 = vadd.f32 0.0, %v426
        %v428 = vpop.f32.mrb[0].mxu0
        %429 = vmatprep.mubr.f32.mxu0 0.0
        %430 = vmatmul.mubr.f32.gmra.mrb[0].mxu0 %v306
        %v431 = vpop.f32.mrb[0].mxu0
        %v432 = vadd.f32 0.0, %v431
        %v433 = vpop.f32.mrb[0].mxu0
        %434 = vmatprep.mubr.f32.mxu0 0.0
        %435 = vmatmul.mubr.f32.gmra.mrb[0].mxu0 %v309
        %v436 = vpop.f32.mrb[0].mxu0
        %v437 = vadd.f32 0.0, %v436
        %v438 = vpop.f32.mrb[0].mxu0
        %439 = vmatprep.mubr.f32.mxu0 0.0
        %440 = vmatmul.mubr.f32.gmra.mrb[0].mxu0 %v312
        %v441 = vpop.f32.mrb[0].mxu0
        %v442 = vadd.f32 0.0, %v441
        %v443 = vpop.f32.mrb[0].mxu0
        %444 = vmatprep.mubr.f32.mxu0 0.0
        %445 = vmatmul.mubr.f32.gmra.mrb[0].mxu0 %v315
        %v446 = vpop.f32.mrb[0].mxu0
        %v447 = vadd.f32 0.0, %v446
        %v448 = vpop.f32.mrb[0].mxu0
        %449 = vmatprep.mubr.f32.mxu0 0.0
        %450 = vmatmul.mubr.f32.gmra.mrb[0].mxu0 %v318
        %v451 = vpop.f32.mrb[0].mxu0
        %v452 = vadd.f32 0.0, %v451
        %v453 = vpop.f32.mrb[0].mxu0
        %454 = vmatprep.mubr.f32.mxu0 0.0
        %455 = vmatmul.mubr.f32.gmra.mrb[0].mxu0 %v321
        %v456 = vpop.f32.mrb[0].mxu0
        %v457 = vadd.f32 0.0, %v456
        %v458 = vpop.f32.mrb[0].mxu0
        %459 = vmatprep.mubr.f32.mxu0 0.0
        %460 = vmatmul.mubr.f32.gmra.mrb[0].mxu0 %v324
        %v461 = vpop.f32.mrb[0].mxu0
        %v462 = vadd.f32 0.0, %v461
        %v463 = vpop.f32.mrb[0].mxu0
        %464 = vmatprep.mubr.f32.mxu0 0.0
        %465 = vmatmul.mubr.f32.gmra.mrb[0].mxu0 %v327
        %v466 = vpop.f32.mrb[0].mxu0
        %v467 = vadd.f32 0.0, %v466
        %v468 = vpop.f32.mrb[0].mxu0
        %469 = vmatprep.mubr.f32.mxu0 0.0
        %470 = vmatmul.mubr.f32.gmra.mrb[0].mxu0 %v330
        %v471 = vpop.f32.mrb[0].mxu0
        %v472 = vadd.f32 0.0, %v471
        %v473 = vpop.f32.mrb[0].mxu0
        %474 = vmatprep.mubr.f32.mxu0 0.0
        %475 = vmatmul.mubr.f32.gmra.mrb[0].mxu0 %v333
        %v476 = vpop.f32.mrb[0].mxu0
        %v477 = vadd.f32 0.0, %v476
        %v478 = vpop.f32.mrb[0].mxu0
        %479 = vdwg.mxu0
        %v481 = vsel %vm286, %v270, 0
        %v484 = vsel %vm286, %v271, 0
        %v487 = vsel %vm286, %v272, 0
        %v490 = vsel %vm286, %v273, 0
        %v493 = vsel %vm286, %v274, 0
        %v496 = vsel %vm286, %v275, 0
        %v499 = vsel %vm286, %v276, 0
        %v502 = vsel %vm286, %v277, 0
        %v505 = vsel %vm286, %v278, 0
        %v508 = vsel %vm286, %v279, 0
        %v511 = vsel %vm286, %v280, 0
        %v514 = vsel %vm286, %v281, 0
        %v517 = vsel %vm286, %v282, 0
        %v520 = vsel %vm286, %v283, 0
        %v523 = vsel %vm286, %v284, 0
        %v526 = vsel %vm286, %v285, 0
        %528 = vmatprep.subr.mxu0 0.0
        %529 = vmatpush1.msra.mxu0 %v181
        %530 = vmatprep.subr.mxu0 0.0
        %531 = vmatpush1.msra.mxu0 %v182
        %532 = vmatprep.subr.mxu0 0.0
        %533 = vmatpush1.msra.mxu0 %v183
        %534 = vmatprep.subr.mxu0 0.0
        %535 = vmatpush1.msra.mxu0 %v184
        %536 = vmatprep.subr.mxu0 0.0
        %537 = vmatpush1.msra.mxu0 %v185
        %538 = vmatprep.subr.mxu0 0.0
        %539 = vmatpush1.msra.mxu0 %v186
        %540 = vmatprep.subr.mxu0 0.0
        %541 = vmatpush1.msra.mxu0 %v187
        %542 = vmatprep.subr.mxu0 0.0
        %543 = vmatpush1.msra.mxu0 %v188
        %544 = vmatprep.subr.mxu0 0.0
        %545 = vmatpush1.msra.mxu0 0.0
        %546 = vmatprep.subr.mxu0 0.0
        %547 = vmatpush1.msra.mxu0 0.0
        %548 = vmatprep.subr.mxu0 0.0
        %549 = vmatpush1.msra.mxu0 0.0
        %550 = vmatprep.subr.mxu0 0.0
        %551 = vmatpush1.msra.mxu0 0.0
        %552 = vmatprep.subr.mxu0 0.0
        %553 = vmatpush1.msra.mxu0 0.0
        %554 = vmatprep.subr.mxu0 0.0
        %555 = vmatpush1.msra.mxu0 0.0
        %556 = vmatprep.subr.mxu0 0.0
        %557 = vmatpush1.msra.mxu0 0.0
        %558 = vmatprep.subr.mxu0 0.0
        %559 = vmatpush1.msra.mxu0 0.0
        %560 = vmatprep.subr.mxu0 0.0
        %561 = vmatpush1.msra.mxu0 0.0
        %562 = vmatprep.subr.mxu0 0.0
        %563 = vmatpush1.msra.mxu0 0.0
        %564 = vmatprep.subr.mxu0 0.0
        %565 = vmatpush1.msra.mxu0 0.0
        %566 = vmatprep.subr.mxu0 0.0
        %567 = vmatpush1.msra.mxu0 0.0
        %568 = vmatprep.subr.mxu0 0.0
        %569 = vmatpush1.msra.mxu0 0.0
        %570 = vmatprep.subr.mxu0 0.0
        %571 = vmatpush1.msra.mxu0 0.0
        %572 = vmatprep.subr.mxu0 0.0
        %573 = vmatpush1.msra.mxu0 0.0
        %574 = vmatprep.subr.mxu0 0.0
        %575 = vmatpush1.msra.mxu0 0.0
        %576 = vmatprep.subr.mxu0 0.0
        %577 = vmatpush1.msra.mxu0 0.0
        %578 = vmatprep.subr.mxu0 0.0
        %579 = vmatpush1.msra.mxu0 0.0
        %580 = vmatprep.subr.mxu0 0.0
        %581 = vmatpush1.msra.mxu0 0.0
        %582 = vmatprep.subr.mxu0 0.0
        %583 = vmatpush1.msra.mxu0 0.0
        %584 = vmatprep.subr.mxu0 0.0
        %585 = vmatpush1.msra.mxu0 0.0
        %586 = vmatprep.subr.mxu0 0.0
        %587 = vmatpush1.msra.mxu0 0.0
        %588 = vmatprep.subr.mxu0 0.0
        %589 = vmatpush1.msra.mxu0 0.0
        %590 = vmatprep.subr.mxu0 0.0
        %591 = vmatpush1.msra.mxu0 0.0
        %592 = vmatprep.mubr.f32.mxu0 0.0
        %593 = vmatmul.mubr.f32.gmra.mrb[0].mxu0 %v481
        %v594 = vpop.f32.mrb[0].mxu0
        %v595 = vadd.f32 0.0, %v594
        %v596 = vpop.f32.mrb[0].mxu0
        %597 = vmatprep.mubr.f32.mxu0 0.0
        %598 = vmatmul.mubr.f32.gmra.mrb[0].mxu0 %v484
        %v599 = vpop.f32.mrb[0].mxu0
        %v600 = vadd.f32 0.0, %v599
        %v601 = vpop.f32.mrb[0].mxu0
        %602 = vmatprep.mubr.f32.mxu0 0.0
        %603 = vmatmul.mubr.f32.gmra.mrb[0].mxu0 %v487
        %v604 = vpop.f32.mrb[0].mxu0
        %v605 = vadd.f32 0.0, %v604
        %v606 = vpop.f32.mrb[0].mxu0
        %607 = vmatprep.mubr.f32.mxu0 0.0
        %608 = vmatmul.mubr.f32.gmra.mrb[0].mxu0 %v490
        %v609 = vpop.f32.mrb[0].mxu0
        %v610 = vadd.f32 0.0, %v609
        %v611 = vpop.f32.mrb[0].mxu0
        %612 = vmatprep.mubr.f32.mxu0 0.0
        %613 = vmatmul.mubr.f32.gmra.mrb[0].mxu0 %v493
        %v614 = vpop.f32.mrb[0].mxu0
        %v615 = vadd.f32 0.0, %v614
        %v616 = vpop.f32.mrb[0].mxu0
        %617 = vmatprep.mubr.f32.mxu0 0.0
        %618 = vmatmul.mubr.f32.gmra.mrb[0].mxu0 %v496
        %v619 = vpop.f32.mrb[0].mxu0
        %v620 = vadd.f32 0.0, %v619
        %v621 = vpop.f32.mrb[0].mxu0
        %622 = vmatprep.mubr.f32.mxu0 0.0
        %623 = vmatmul.mubr.f32.gmra.mrb[0].mxu0 %v499
        %v624 = vpop.f32.mrb[0].mxu0
        %v625 = vadd.f32 0.0, %v624
        %v626 = vpop.f32.mrb[0].mxu0
        %627 = vmatprep.mubr.f32.mxu0 0.0
        %628 = vmatmul.mubr.f32.gmra.mrb[0].mxu0 %v502
        %v629 = vpop.f32.mrb[0].mxu0
        %v630 = vadd.f32 0.0, %v629
        %v631 = vpop.f32.mrb[0].mxu0
        %632 = vmatprep.mubr.f32.mxu0 0.0
        %633 = vmatmul.mubr.f32.gmra.mrb[0].mxu0 %v505
        %v634 = vpop.f32.mrb[0].mxu0
        %v635 = vadd.f32 0.0, %v634
        %v636 = vpop.f32.mrb[0].mxu0
        %637 = vmatprep.mubr.f32.mxu0 0.0
        %638 = vmatmul.mubr.f32.gmra.mrb[0].mxu0 %v508
        %v639 = vpop.f32.mrb[0].mxu0
        %v640 = vadd.f32 0.0, %v639
        %v641 = vpop.f32.mrb[0].mxu0
        %642 = vmatprep.mubr.f32.mxu0 0.0
        %643 = vmatmul.mubr.f32.gmra.mrb[0].mxu0 %v511
        %v644 = vpop.f32.mrb[0].mxu0
        %v645 = vadd.f32 0.0, %v644
        %v646 = vpop.f32.mrb[0].mxu0
        %647 = vmatprep.mubr.f32.mxu0 0.0
        %648 = vmatmul.mubr.f32.gmra.mrb[0].mxu0 %v514
        %v649 = vpop.f32.mrb[0].mxu0
        %v650 = vadd.f32 0.0, %v649
        %v651 = vpop.f32.mrb[0].mxu0
        %652 = vmatprep.mubr.f32.mxu0 0.0
        %653 = vmatmul.mubr.f32.gmra.mrb[0].mxu0 %v517
        %v654 = vpop.f32.mrb[0].mxu0
        %v655 = vadd.f32 0.0, %v654
        %v656 = vpop.f32.mrb[0].mxu0
        %657 = vmatprep.mubr.f32.mxu0 0.0
        %658 = vmatmul.mubr.f32.gmra.mrb[0].mxu0 %v520
        %v659 = vpop.f32.mrb[0].mxu0
        %v660 = vadd.f32 0.0, %v659
        %v661 = vpop.f32.mrb[0].mxu0
        %662 = vmatprep.mubr.f32.mxu0 0.0
        %663 = vmatmul.mubr.f32.gmra.mrb[0].mxu0 %v523
        %v664 = vpop.f32.mrb[0].mxu0
        %v665 = vadd.f32 0.0, %v664
        %v666 = vpop.f32.mrb[0].mxu0
        %667 = vmatprep.mubr.f32.mxu0 0.0
        %668 = vmatmul.mubr.f32.gmra.mrb[0].mxu0 %v526
        %v669 = vpop.f32.mrb[0].mxu0
        %v670 = vadd.f32 0.0, %v669
        %v671 = vpop.f32.mrb[0].mxu0
        %672 = vdwg.mxu0
        %673 = vmax.xlane.f32.xlu0 %v402
        %v674 = vpop.xlane.xlu0 %673
        %675 = vmax.xlane.f32.xlu0 %v407
        %v676 = vpop.xlane.xlu0 %675
        %677 = vmax.xlane.f32.xlu0 %v412
        %v678 = vpop.xlane.xlu0 %677
        %679 = vmax.xlane.f32.xlu0 %v417
        %v680 = vpop.xlane.xlu0 %679
        %681 = vmax.xlane.f32.xlu0 %v422
        %v682 = vpop.xlane.xlu0 %681
        %683 = vmax.xlane.f32.xlu0 %v427
        %v684 = vpop.xlane.xlu0 %683
        %685 = vmax.xlane.f32.xlu0 %v432
        %v686 = vpop.xlane.xlu0 %685
        %687 = vmax.xlane.f32.xlu0 %v437
        %v688 = vpop.xlane.xlu0 %687
        %689 = vmax.xlane.f32.xlu0 %v442
        %v690 = vpop.xlane.xlu0 %689
        %691 = vmax.xlane.f32.xlu0 %v447
        %v692 = vpop.xlane.xlu0 %691
        %693 = vmax.xlane.f32.xlu0 %v452
        %v694 = vpop.xlane.xlu0 %693
        %695 = vmax.xlane.f32.xlu0 %v457
        %v696 = vpop.xlane.xlu0 %695
        %697 = vmax.xlane.f32.xlu0 %v462
        %v698 = vpop.xlane.xlu0 %697
        %699 = vmax.xlane.f32.xlu0 %v467
        %v700 = vpop.xlane.xlu0 %699
        %701 = vmax.xlane.f32.xlu0 %v472
        %v702 = vpop.xlane.xlu0 %701
        %703 = vmax.xlane.f32.xlu0 %v477
        %v704 = vpop.xlane.xlu0 %703
        %705 = vmax.xlane.f32.xlu0 %v595
        %v706 = vpop.xlane.xlu0 %705
        %707 = vmax.xlane.f32.xlu0 %v600
        %v708 = vpop.xlane.xlu0 %707
        %709 = vmax.xlane.f32.xlu0 %v605
        %v710 = vpop.xlane.xlu0 %709
        %711 = vmax.xlane.f32.xlu0 %v610
        %v712 = vpop.xlane.xlu0 %711
        %713 = vmax.xlane.f32.xlu0 %v615
        %v714 = vpop.xlane.xlu0 %713
        %715 = vmax.xlane.f32.xlu0 %v620
        %v716 = vpop.xlane.xlu0 %715
        %717 = vmax.xlane.f32.xlu0 %v625
        %v718 = vpop.xlane.xlu0 %717
        %719 = vmax.xlane.f32.xlu0 %v630
        %v720 = vpop.xlane.xlu0 %719
        %721 = vmax.xlane.f32.xlu0 %v635
        %v722 = vpop.xlane.xlu0 %721
        %723 = vmax.xlane.f32.xlu0 %v640
        %v724 = vpop.xlane.xlu0 %723
        %725 = vmax.xlane.f32.xlu0 %v645
        %v726 = vpop.xlane.xlu0 %725
        %727 = vmax.xlane.f32.xlu0 %v650
        %v728 = vpop.xlane.xlu0 %727
        %729 = vmax.xlane.f32.xlu0 %v655
        %v730 = vpop.xlane.xlu0 %729
        %731 = vmax.xlane.f32.xlu0 %v660
        %v732 = vpop.xlane.xlu0 %731
        %733 = vmax.xlane.f32.xlu0 %v665
        %v734 = vpop.xlane.xlu0 %733
        %735 = vmax.xlane.f32.xlu0 %v670
        %v736 = vpop.xlane.xlu0 %735
        %v737 = vsub.f32 %v402, %v674
        %v738 = vsub.f32 %v407, %v676
        %v739 = vsub.f32 %v412, %v678
        %v740 = vsub.f32 %v417, %v680
        %v741 = vsub.f32 %v422, %v682
        %v742 = vsub.f32 %v427, %v684
        %v743 = vsub.f32 %v432, %v686
        %v744 = vsub.f32 %v437, %v688
        %v745 = vsub.f32 %v442, %v690
        %v746 = vsub.f32 %v447, %v692
        %v747 = vsub.f32 %v452, %v694
        %v748 = vsub.f32 %v457, %v696
        %v749 = vsub.f32 %v462, %v698
        %v750 = vsub.f32 %v467, %v700
        %v751 = vsub.f32 %v472, %v702
        %v752 = vsub.f32 %v477, %v704
        %v753 = vsub.f32 %v595, %v706
        %v754 = vsub.f32 %v600, %v708
        %v755 = vsub.f32 %v605, %v710
        %v756 = vsub.f32 %v610, %v712
        %v757 = vsub.f32 %v615, %v714
        %v758 = vsub.f32 %v620, %v716
        %v759 = vsub.f32 %v625, %v718
        %v760 = vsub.f32 %v630, %v720
        %v761 = vsub.f32 %v635, %v722
        %v762 = vsub.f32 %v640, %v724
        %v763 = vsub.f32 %v645, %v726
        %v764 = vsub.f32 %v650, %v728
        %v765 = vsub.f32 %v655, %v730
        %v766 = vsub.f32 %v660, %v732
        %v767 = vsub.f32 %v665, %v734
        %v768 = vsub.f32 %v670, %v736
        %v769 = vmul.f32 %v737, 1.442695
        %v770 = vpow.pop %v769
        %v771 = vmul.f32 %v738, 1.442695
        %v772 = vpow.pop %v771
        %v773 = vmul.f32 %v739, 1.442695
        %v774 = vpow.pop %v773
        %v775 = vmul.f32 %v740, 1.442695
        %v776 = vpow.pop %v775
        %v777 = vmul.f32 %v741, 1.442695
        %v778 = vpow.pop %v777
        %v779 = vmul.f32 %v742, 1.442695
        %v780 = vpow.pop %v779
        %v781 = vmul.f32 %v743, 1.442695
        %v782 = vpow.pop %v781
        %v783 = vmul.f32 %v744, 1.442695
        %v784 = vpow.pop %v783
        %v785 = vmul.f32 %v745, 1.442695
        %v786 = vpow.pop %v785
        %v787 = vmul.f32 %v746, 1.442695
        %v788 = vpow.pop %v787
        %v789 = vmul.f32 %v747, 1.442695
        %v790 = vpow.pop %v789
        %v791 = vmul.f32 %v748, 1.442695
        %v792 = vpow.pop %v791
        %v793 = vmul.f32 %v749, 1.442695
        %v794 = vpow.pop %v793
        %v795 = vmul.f32 %v750, 1.442695
        %v796 = vpow.pop %v795
        %v797 = vmul.f32 %v751, 1.442695
        %v798 = vpow.pop %v797
        %v799 = vmul.f32 %v752, 1.442695
        %v800 = vpow.pop %v799
        %v801 = vmul.f32 %v753, 1.442695
        %v802 = vpow.pop %v801
        %v803 = vmul.f32 %v754, 1.442695
        %v804 = vpow.pop %v803
        %v805 = vmul.f32 %v755, 1.442695
        %v806 = vpow.pop %v805
        %v807 = vmul.f32 %v756, 1.442695
        %v808 = vpow.pop %v807
        %v809 = vmul.f32 %v757, 1.442695
        %v810 = vpow.pop %v809
        %v811 = vmul.f32 %v758, 1.442695
        %v812 = vpow.pop %v811
        %v813 = vmul.f32 %v759, 1.442695
        %v814 = vpow.pop %v813
        %v815 = vmul.f32 %v760, 1.442695
        %v816 = vpow.pop %v815
        %v817 = vmul.f32 %v761, 1.442695
        %v818 = vpow.pop %v817
        %v819 = vmul.f32 %v762, 1.442695
        %v820 = vpow.pop %v819
        %v821 = vmul.f32 %v763, 1.442695
        %v822 = vpow.pop %v821
        %v823 = vmul.f32 %v764, 1.442695
        %v824 = vpow.pop %v823
        %v825 = vmul.f32 %v765, 1.442695
        %v826 = vpow.pop %v825
        %v827 = vmul.f32 %v766, 1.442695
        %v828 = vpow.pop %v827
        %v829 = vmul.f32 %v767, 1.442695
        %v830 = vpow.pop %v829
        %v831 = vmul.f32 %v768, 1.442695
        %v832 = vpow.pop %v831
        %833 = vadd.xlane.f32.xlu0 %v770
        %v834 = vpop.xlane.xlu0 %833
        %835 = vadd.xlane.f32.xlu0 %v772
        %v836 = vpop.xlane.xlu0 %835
        %837 = vadd.xlane.f32.xlu0 %v774
        %v838 = vpop.xlane.xlu0 %837
        %839 = vadd.xlane.f32.xlu0 %v776
        %v840 = vpop.xlane.xlu0 %839
        %841 = vadd.xlane.f32.xlu0 %v778
        %v842 = vpop.xlane.xlu0 %841
        %843 = vadd.xlane.f32.xlu0 %v780
        %v844 = vpop.xlane.xlu0 %843
        %845 = vadd.xlane.f32.xlu0 %v782
        %v846 = vpop.xlane.xlu0 %845
        %847 = vadd.xlane.f32.xlu0 %v784
        %v848 = vpop.xlane.xlu0 %847
        %849 = vadd.xlane.f32.xlu0 %v786
        %v850 = vpop.xlane.xlu0 %849
        %851 = vadd.xlane.f32.xlu0 %v788
        %v852 = vpop.xlane.xlu0 %851
        %853 = vadd.xlane.f32.xlu0 %v790
        %v854 = vpop.xlane.xlu0 %853
        %855 = vadd.xlane.f32.xlu0 %v792
        %v856 = vpop.xlane.xlu0 %855
        %857 = vadd.xlane.f32.xlu0 %v794
        %v858 = vpop.xlane.xlu0 %857
        %859 = vadd.xlane.f32.xlu0 %v796
        %v860 = vpop.xlane.xlu0 %859
        %861 = vadd.xlane.f32.xlu0 %v798
        %v862 = vpop.xlane.xlu0 %861
        %863 = vadd.xlane.f32.xlu0 %v800
        %v864 = vpop.xlane.xlu0 %863
        %865 = vadd.xlane.f32.xlu0 %v802
        %v866 = vpop.xlane.xlu0 %865
        %867 = vadd.xlane.f32.xlu0 %v804
        %v868 = vpop.xlane.xlu0 %867
        %869 = vadd.xlane.f32.xlu0 %v806
        %v870 = vpop.xlane.xlu0 %869
        %871 = vadd.xlane.f32.xlu0 %v808
        %v872 = vpop.xlane.xlu0 %871
        %873 = vadd.xlane.f32.xlu0 %v810
        %v874 = vpop.xlane.xlu0 %873
        %875 = vadd.xlane.f32.xlu0 %v812
        %v876 = vpop.xlane.xlu0 %875
        %877 = vadd.xlane.f32.xlu0 %v814
        %v878 = vpop.xlane.xlu0 %877
        %879 = vadd.xlane.f32.xlu0 %v816
        %v880 = vpop.xlane.xlu0 %879
        %881 = vadd.xlane.f32.xlu0 %v818
        %v882 = vpop.xlane.xlu0 %881
        %883 = vadd.xlane.f32.xlu0 %v820
        %v884 = vpop.xlane.xlu0 %883
        %885 = vadd.xlane.f32.xlu0 %v822
        %v886 = vpop.xlane.xlu0 %885
        %887 = vadd.xlane.f32.xlu0 %v824
        %v888 = vpop.xlane.xlu0 %887
        %889 = vadd.xlane.f32.xlu0 %v826
        %v890 = vpop.xlane.xlu0 %889
        %891 = vadd.xlane.f32.xlu0 %v828
        %v892 = vpop.xlane.xlu0 %891
        %893 = vadd.xlane.f32.xlu0 %v830
        %v894 = vpop.xlane.xlu0 %893
        %895 = vadd.xlane.f32.xlu0 %v832
        %v896 = vpop.xlane.xlu0 %895
        %897 = vmatprep.subr.mxu0 0.0
        %898 = vmatpush1.xpose.msra.mxu0 %v770
        %899 = vmatprep.subr.mxu0 0.0
        %900 = vmatpush1.xpose.msra.mxu0 %v772
        %901 = vmatprep.subr.mxu0 0.0
        %902 = vmatpush1.xpose.msra.mxu0 %v774
        %903 = vmatprep.subr.mxu0 0.0
        %904 = vmatpush1.xpose.msra.mxu0 %v776
        %905 = vmatprep.subr.mxu0 0.0
        %906 = vmatpush1.xpose.msra.mxu0 %v778
        %907 = vmatprep.subr.mxu0 0.0
        %908 = vmatpush1.xpose.msra.mxu0 %v780
        %909 = vmatprep.subr.mxu0 0.0
        %910 = vmatpush1.xpose.msra.mxu0 %v782
        %911 = vmatprep.subr.mxu0 0.0
        %912 = vmatpush1.xpose.msra.mxu0 %v784
        %913 = vmatprep.subr.mxu0 0.0
        %914 = vmatpush1.xpose.msra.mxu0 %v786
        %915 = vmatprep.subr.mxu0 0.0
        %916 = vmatpush1.xpose.msra.mxu0 %v788
        %917 = vmatprep.subr.mxu0 0.0
        %918 = vmatpush1.xpose.msra.mxu0 %v790
        %919 = vmatprep.subr.mxu0 0.0
        %920 = vmatpush1.xpose.msra.mxu0 %v792
        %921 = vmatprep.subr.mxu0 0.0
        %922 = vmatpush1.xpose.msra.mxu0 %v794
        %923 = vmatprep.subr.mxu0 0.0
        %924 = vmatpush1.xpose.msra.mxu0 %v796
        %925 = vmatprep.subr.mxu0 0.0
        %926 = vmatpush1.xpose.msra.mxu0 %v798
        %927 = vmatprep.subr.mxu0 0.0
        %928 = vmatpush1.xpose.msra.mxu0 %v800
        %929 = vmatprep.subr.mxu0 0.0
        %930 = vmatpush1.xpose.msra.mxu0 0.0
        %931 = vmatprep.subr.mxu0 0.0
        %932 = vmatpush1.xpose.msra.mxu0 0.0
        %933 = vmatprep.subr.mxu0 0.0
        %934 = vmatpush1.xpose.msra.mxu0 0.0
        %935 = vmatprep.subr.mxu0 0.0
        %936 = vmatpush1.xpose.msra.mxu0 0.0
        %937 = vmatprep.subr.mxu0 0.0
        %938 = vmatpush1.xpose.msra.mxu0 0.0
        %939 = vmatprep.subr.mxu0 0.0
        %940 = vmatpush1.xpose.msra.mxu0 0.0
        %941 = vmatprep.subr.mxu0 0.0
        %942 = vmatpush1.xpose.msra.mxu0 0.0
        %943 = vmatprep.subr.mxu0 0.0
        %944 = vmatpush1.xpose.msra.mxu0 0.0
        %945 = vmatprep.subr.mxu0 0.0
        %946 = vmatpush1.xpose.msra.mxu0 0.0
        %947 = vmatprep.subr.mxu0 0.0
        %948 = vmatpush1.xpose.msra.mxu0 0.0
        %949 = vmatprep.subr.mxu0 0.0
        %950 = vmatpush1.xpose.msra.mxu0 0.0
        %951 = vmatprep.subr.mxu0 0.0
        %952 = vmatpush1.xpose.msra.mxu0 0.0
        %953 = vmatprep.subr.mxu0 0.0
        %954 = vmatpush1.xpose.msra.mxu0 0.0
        %955 = vmatprep.subr.mxu0 0.0
        %956 = vmatpush1.xpose.msra.mxu0 0.0
        %957 = vmatprep.subr.mxu0 0.0
        %958 = vmatpush1.xpose.msra.mxu0 0.0
        %959 = vmatprep.subr.mxu0 0.0
        %960 = vmatpush1.xpose.msra.mxu0 0.0
        %961 = vmatprep.mubr.f32.mxu0 0.0
        %962 = vmatmul.mubr.f32.gmra.mrb[0].mxu0 %v190
        %v963 = vpop.f32.mrb[0].mxu0
        %v964 = vadd.f32 0.0, %v963
        %v965 = vpop.f32.mrb[0].mxu0
        %966 = vmatprep.mubr.f32.mxu0 0.0
        %967 = vmatmul.mubr.f32.gmra.mrb[0].mxu0 %v191
        %v968 = vpop.f32.mrb[0].mxu0
        %v969 = vadd.f32 0.0, %v968
        %v970 = vpop.f32.mrb[0].mxu0
        %971 = vmatprep.mubr.f32.mxu0 0.0
        %972 = vmatmul.mubr.f32.gmra.mrb[0].mxu0 %v192
        %v973 = vpop.f32.mrb[0].mxu0
        %v974 = vadd.f32 0.0, %v973
        %v975 = vpop.f32.mrb[0].mxu0
        %976 = vmatprep.mubr.f32.mxu0 0.0
        %977 = vmatmul.mubr.f32.gmra.mrb[0].mxu0 %v193
        %v978 = vpop.f32.mrb[0].mxu0
        %v979 = vadd.f32 0.0, %v978
        %v980 = vpop.f32.mrb[0].mxu0
        %981 = vmatprep.mubr.f32.mxu0 0.0
        %982 = vmatmul.mubr.f32.gmra.mrb[0].mxu0 %v194
        %v983 = vpop.f32.mrb[0].mxu0
        %v984 = vadd.f32 0.0, %v983
        %v985 = vpop.f32.mrb[0].mxu0
        %986 = vmatprep.mubr.f32.mxu0 0.0
        %987 = vmatmul.mubr.f32.gmra.mrb[0].mxu0 %v195
        %v988 = vpop.f32.mrb[0].mxu0
        %v989 = vadd.f32 0.0, %v988
        %v990 = vpop.f32.mrb[0].mxu0
        %991 = vmatprep.mubr.f32.mxu0 0.0
        %992 = vmatmul.mubr.f32.gmra.mrb[0].mxu0 %v196
        %v993 = vpop.f32.mrb[0].mxu0
        %v994 = vadd.f32 0.0, %v993
        %v995 = vpop.f32.mrb[0].mxu0
        %996 = vmatprep.mubr.f32.mxu0 0.0
        %997 = vmatmul.mubr.f32.gmra.mrb[0].mxu0 %v197
        %v998 = vpop.f32.mrb[0].mxu0
        %v999 = vadd.f32 0.0, %v998
        %v1000 = vpop.f32.mrb[0].mxu0
        %1001 = vdwg.mxu0
        %1002 = vmatprep.subr.mxu0 0.0
        %1003 = vmatpush1.xpose.msra.mxu0 %v802
        %1004 = vmatprep.subr.mxu0 0.0
        %1005 = vmatpush1.xpose.msra.mxu0 %v804
        %1006 = vmatprep.subr.mxu0 0.0
        %1007 = vmatpush1.xpose.msra.mxu0 %v806
        %1008 = vmatprep.subr.mxu0 0.0
        %1009 = vmatpush1.xpose.msra.mxu0 %v808
        %1010 = vmatprep.subr.mxu0 0.0
        %1011 = vmatpush1.xpose.msra.mxu0 %v810
        %1012 = vmatprep.subr.mxu0 0.0
        %1013 = vmatpush1.xpose.msra.mxu0 %v812
        %1014 = vmatprep.subr.mxu0 0.0
        %1015 = vmatpush1.xpose.msra.mxu0 %v814
        %1016 = vmatprep.subr.mxu0 0.0
        %1017 = vmatpush1.xpose.msra.mxu0 %v816
        %1018 = vmatprep.subr.mxu0 0.0
        %1019 = vmatpush1.xpose.msra.mxu0 %v818
        %1020 = vmatprep.subr.mxu0 0.0
        %1021 = vmatpush1.xpose.msra.mxu0 %v820
        %1022 = vmatprep.subr.mxu0 0.0
        %1023 = vmatpush1.xpose.msra.mxu0 %v822
        %1024 = vmatprep.subr.mxu0 0.0
        %1025 = vmatpush1.xpose.msra.mxu0 %v824
        %1026 = vmatprep.subr.mxu0 0.0
        %1027 = vmatpush1.xpose.msra.mxu0 %v826
        %1028 = vmatprep.subr.mxu0 0.0
        %1029 = vmatpush1.xpose.msra.mxu0 %v828
        %1030 = vmatprep.subr.mxu0 0.0
        %1031 = vmatpush1.xpose.msra.mxu0 %v830
        %1032 = vmatprep.subr.mxu0 0.0
        %1033 = vmatpush1.xpose.msra.mxu0 %v832
        %1034 = vmatprep.subr.mxu0 0.0
        %1035 = vmatpush1.xpose.msra.mxu0 0.0
        %1036 = vmatprep.subr.mxu0 0.0
        %1037 = vmatpush1.xpose.msra.mxu0 0.0
        %1038 = vmatprep.subr.mxu0 0.0
        %1039 = vmatpush1.xpose.msra.mxu0 0.0
        %1040 = vmatprep.subr.mxu0 0.0
        %1041 = vmatpush1.xpose.msra.mxu0 0.0
        %1042 = vmatprep.subr.mxu0 0.0
        %1043 = vmatpush1.xpose.msra.mxu0 0.0
        %1044 = vmatprep.subr.mxu0 0.0
        %1045 = vmatpush1.xpose.msra.mxu0 0.0
        %1046 = vmatprep.subr.mxu0 0.0
        %1047 = vmatpush1.xpose.msra.mxu0 0.0
        %1048 = vmatprep.subr.mxu0 0.0
        %1049 = vmatpush1.xpose.msra.mxu0 0.0
        %1050 = vmatprep.subr.mxu0 0.0
        %1051 = vmatpush1.xpose.msra.mxu0 0.0
        %1052 = vmatprep.subr.mxu0 0.0
        %1053 = vmatpush1.xpose.msra.mxu0 0.0
        %1054 = vmatprep.subr.mxu0 0.0
        %1055 = vmatpush1.xpose.msra.mxu0 0.0
        %1056 = vmatprep.subr.mxu0 0.0
        %1057 = vmatpush1.xpose.msra.mxu0 0.0
        %1058 = vmatprep.subr.mxu0 0.0
        %1059 = vmatpush1.xpose.msra.mxu0 0.0
        %1060 = vmatprep.subr.mxu0 0.0
        %1061 = vmatpush1.xpose.msra.mxu0 0.0
        %1062 = vmatprep.subr.mxu0 0.0
        %1063 = vmatpush1.xpose.msra.mxu0 0.0
        %1064 = vmatprep.subr.mxu0 0.0
        %1065 = vmatpush1.xpose.msra.mxu0 0.0
        %1066 = vmatprep.mubr.f32.mxu0 0.0
        %1067 = vmatmul.mubr.f32.gmra.mrb[0].mxu0 %v198
        %v1068 = vpop.f32.mrb[0].mxu0
        %v1069 = vadd.f32 0.0, %v1068
        %v1070 = vpop.f32.mrb[0].mxu0
        %1071 = vmatprep.mubr.f32.mxu0 0.0
        %1072 = vmatmul.mubr.f32.gmra.mrb[0].mxu0 %v199
        %v1073 = vpop.f32.mrb[0].mxu0
        %v1074 = vadd.f32 0.0, %v1073
        %v1075 = vpop.f32.mrb[0].mxu0
        %1076 = vmatprep.mubr.f32.mxu0 0.0
        %1077 = vmatmul.mubr.f32.gmra.mrb[0].mxu0 %v200
        %v1078 = vpop.f32.mrb[0].mxu0
        %v1079 = vadd.f32 0.0, %v1078
        %v1080 = vpop.f32.mrb[0].mxu0
        %1081 = vmatprep.mubr.f32.mxu0 0.0
        %1082 = vmatmul.mubr.f32.gmra.mrb[0].mxu0 %v201
        %v1083 = vpop.f32.mrb[0].mxu0
        %v1084 = vadd.f32 0.0, %v1083
        %v1085 = vpop.f32.mrb[0].mxu0
        %1086 = vmatprep.mubr.f32.mxu0 0.0
        %1087 = vmatmul.mubr.f32.gmra.mrb[0].mxu0 %v202
        %v1088 = vpop.f32.mrb[0].mxu0
        %v1089 = vadd.f32 0.0, %v1088
        %v1090 = vpop.f32.mrb[0].mxu0
        %1091 = vmatprep.mubr.f32.mxu0 0.0
        %1092 = vmatmul.mubr.f32.gmra.mrb[0].mxu0 %v203
        %v1093 = vpop.f32.mrb[0].mxu0
        %v1094 = vadd.f32 0.0, %v1093
        %v1095 = vpop.f32.mrb[0].mxu0
        %1096 = vmatprep.mubr.f32.mxu0 0.0
        %1097 = vmatmul.mubr.f32.gmra.mrb[0].mxu0 %v204
        %v1098 = vpop.f32.mrb[0].mxu0
        %v1099 = vadd.f32 0.0, %v1098
        %v1100 = vpop.f32.mrb[0].mxu0
        %1101 = vmatprep.mubr.f32.mxu0 0.0
        %1102 = vmatmul.mubr.f32.gmra.mrb[0].mxu0 %v205
        %v1103 = vpop.f32.mrb[0].mxu0
        %v1104 = vadd.f32 0.0, %v1103
        %v1105 = vpop.f32.mrb[0].mxu0
        %1106 = vdwg.mxu0
        %v1107 = vrcp.pop %v834
        %v1108 = vmul.f32 1.0, %v1107
        %v1109 = vrcp.pop %v836
        %v1110 = vmul.f32 1.0, %v1109
        %v1111 = vrcp.pop %v838
        %v1112 = vmul.f32 1.0, %v1111
        %v1113 = vrcp.pop %v840
        %v1114 = vmul.f32 1.0, %v1113
        %v1115 = vrcp.pop %v842
        %v1116 = vmul.f32 1.0, %v1115
        %v1117 = vrcp.pop %v844
        %v1118 = vmul.f32 1.0, %v1117
        %v1119 = vrcp.pop %v846
        %v1120 = vmul.f32 1.0, %v1119
        %v1121 = vrcp.pop %v848
        %v1122 = vmul.f32 1.0, %v1121
        %v1123 = vrcp.pop %v850
        %v1124 = vmul.f32 1.0, %v1123
        %v1125 = vrcp.pop %v852
        %v1126 = vmul.f32 1.0, %v1125
        %v1127 = vrcp.pop %v854
        %v1128 = vmul.f32 1.0, %v1127
        %v1129 = vrcp.pop %v856
        %v1130 = vmul.f32 1.0, %v1129
        %v1131 = vrcp.pop %v858
        %v1132 = vmul.f32 1.0, %v1131
        %v1133 = vrcp.pop %v860
        %v1134 = vmul.f32 1.0, %v1133
        %v1135 = vrcp.pop %v862
        %v1136 = vmul.f32 1.0, %v1135
        %v1137 = vrcp.pop %v864
        %v1138 = vmul.f32 1.0, %v1137
        %v1139 = vrcp.pop %v866
        %v1140 = vmul.f32 1.0, %v1139
        %v1141 = vrcp.pop %v868
        %v1142 = vmul.f32 1.0, %v1141
        %v1143 = vrcp.pop %v870
        %v1144 = vmul.f32 1.0, %v1143
        %v1145 = vrcp.pop %v872
        %v1146 = vmul.f32 1.0, %v1145
        %v1147 = vrcp.pop %v874
        %v1148 = vmul.f32 1.0, %v1147
        %v1149 = vrcp.pop %v876
        %v1150 = vmul.f32 1.0, %v1149
        %v1151 = vrcp.pop %v878
        %v1152 = vmul.f32 1.0, %v1151
        %v1153 = vrcp.pop %v880
        %v1154 = vmul.f32 1.0, %v1153
        %v1155 = vrcp.pop %v882
        %v1156 = vmul.f32 1.0, %v1155
        %v1157 = vrcp.pop %v884
        %v1158 = vmul.f32 1.0, %v1157
        %v1159 = vrcp.pop %v886
        %v1160 = vmul.f32 1.0, %v1159
        %v1161 = vrcp.pop %v888
        %v1162 = vmul.f32 1.0, %v1161
        %v1163 = vrcp.pop %v890
        %v1164 = vmul.f32 1.0, %v1163
        %v1165 = vrcp.pop %v892
        %v1166 = vmul.f32 1.0, %v1165
        %v1167 = vrcp.pop %v894
        %v1168 = vmul.f32 1.0, %v1167
        %v1169 = vrcp.pop %v896
        %v1170 = vmul.f32 1.0, %v1169
        %v1203 = vlaneseq
        %v1204 = vand.u32 %v1203, 127
        %v1205 = vlaneseq
        %v1206 = vshrl.u32 %v1205, 7
        %v1207 = vsub.s32 %v1204, %v1206
        %v1208 = vrot.slane %v1108, %v1207
        %v1209 = vadd.s32 %v1204, 4294967288
        %v1210 = vlaneseq
        %v1211 = vshrl.u32 %v1210, 7
        %v1212 = vsub.s32 %v1209, %v1211
        %v1213 = vrot.slane %v1110, %v1212
        %vm1214 = vcmask 130112
        %v1215 = vsel %vm1214, %v1213, %v1208
        %v1216 = vadd.s32 %v1204, 4294967280
        %v1217 = vlaneseq
        %v1218 = vshrl.u32 %v1217, 7
        %v1219 = vsub.s32 %v1216, %v1218
        %v1220 = vrot.slane %v1112, %v1219
        %vm1221 = vcmask 195712
        %v1222 = vsel %vm1221, %v1220, %v1215
        %v1223 = vadd.s32 %v1204, 4294967272
        %v1224 = vlaneseq
        %v1225 = vshrl.u32 %v1224, 7
        %v1226 = vsub.s32 %v1223, %v1225
        %v1227 = vrot.slane %v1114, %v1226
        %vm1228 = vcmask 261312
        %v1229 = vsel %vm1228, %v1227, %v1222
        %v1230 = vadd.s32 %v1204, 4294967264
        %v1231 = vlaneseq
        %v1232 = vshrl.u32 %v1231, 7
        %v1233 = vsub.s32 %v1230, %v1232
        %v1234 = vrot.slane %v1116, %v1233
        %vm1235 = vcmask 326912
        %v1236 = vsel %vm1235, %v1234, %v1229
        %v1237 = vadd.s32 %v1204, 4294967256
        %v1238 = vlaneseq
        %v1239 = vshrl.u32 %v1238, 7
        %v1240 = vsub.s32 %v1237, %v1239
        %v1241 = vrot.slane %v1118, %v1240
        %vm1242 = vcmask 392512
        %v1243 = vsel %vm1242, %v1241, %v1236
        %v1244 = vadd.s32 %v1204, 4294967248
        %v1245 = vlaneseq
        %v1246 = vshrl.u32 %v1245, 7
        %v1247 = vsub.s32 %v1244, %v1246
        %v1248 = vrot.slane %v1120, %v1247
        %vm1249 = vcmask 458112
        %v1250 = vsel %vm1249, %v1248, %v1243
        %v1251 = vadd.s32 %v1204, 4294967240
        %v1252 = vlaneseq
        %v1253 = vshrl.u32 %v1252, 7
        %v1254 = vsub.s32 %v1251, %v1253
        %v1255 = vrot.slane %v1122, %v1254
        %vm1256 = vcmask 523712
        %v1257 = vsel %vm1256, %v1255, %v1250
        %v1258 = vadd.s32 %v1204, 4294967232
        %v1259 = vlaneseq
        %v1260 = vshrl.u32 %v1259, 7
        %v1261 = vsub.s32 %v1258, %v1260
        %v1262 = vrot.slane %v1124, %v1261
        %vm1263 = vcmask 589312
        %v1264 = vsel %vm1263, %v1262, %v1257
        %v1265 = vadd.s32 %v1204, 4294967224
        %v1266 = vlaneseq
        %v1267 = vshrl.u32 %v1266, 7
        %v1268 = vsub.s32 %v1265, %v1267
        %v1269 = vrot.slane %v1126, %v1268
        %vm1270 = vcmask 654912
        %v1271 = vsel %vm1270, %v1269, %v1264
        %v1272 = vadd.s32 %v1204, 4294967216
        %v1273 = vlaneseq
        %v1274 = vshrl.u32 %v1273, 7
        %v1275 = vsub.s32 %v1272, %v1274
        %v1276 = vrot.slane %v1128, %v1275
        %vm1277 = vcmask 720512
        %v1278 = vsel %vm1277, %v1276, %v1271
        %v1279 = vadd.s32 %v1204, 4294967208
        %v1280 = vlaneseq
        %v1281 = vshrl.u32 %v1280, 7
        %v1282 = vsub.s32 %v1279, %v1281
        %v1283 = vrot.slane %v1130, %v1282
        %vm1284 = vcmask 786112
        %v1285 = vsel %vm1284, %v1283, %v1278
        %v1286 = vadd.s32 %v1204, 4294967200
        %v1287 = vlaneseq
        %v1288 = vshrl.u32 %v1287, 7
        %v1289 = vsub.s32 %v1286, %v1288
        %v1290 = vrot.slane %v1132, %v1289
        %vm1291 = vcmask 851712
        %v1292 = vsel %vm1291, %v1290, %v1285
        %v1293 = vadd.s32 %v1204, 4294967192
        %v1294 = vlaneseq
        %v1295 = vshrl.u32 %v1294, 7
        %v1296 = vsub.s32 %v1293, %v1295
        %v1297 = vrot.slane %v1134, %v1296
        %vm1298 = vcmask 917312
        %v1299 = vsel %vm1298, %v1297, %v1292
        %v1300 = vadd.s32 %v1204, 4294967184
        %v1301 = vlaneseq
        %v1302 = vshrl.u32 %v1301, 7
        %v1303 = vsub.s32 %v1300, %v1302
        %v1304 = vrot.slane %v1136, %v1303
        %vm1305 = vcmask 982912
        %v1306 = vsel %vm1305, %v1304, %v1299
        %v1307 = vadd.s32 %v1204, 4294967176
        %v1308 = vlaneseq
        %v1309 = vshrl.u32 %v1308, 7
        %v1310 = vsub.s32 %v1307, %v1309
        %v1311 = vrot.slane %v1138, %v1310
        %vm1312 = vcmask 1048512
        %v1313 = vsel %vm1312, %v1311, %v1306
        %v1314 = vlaneseq
        %v1315 = vshrl.u32 %v1314, 7
        %v1316 = vsub.s32 %v1204, %v1315
        %v1317 = vrot.slane %v1140, %v1316
        %v1318 = vlaneseq
        %v1319 = vshrl.u32 %v1318, 7
        %v1320 = vsub.s32 %v1209, %v1319
        %v1321 = vrot.slane %v1142, %v1320
        %v1322 = vsel %vm1214, %v1321, %v1317
        %v1323 = vlaneseq
        %v1324 = vshrl.u32 %v1323, 7
        %v1325 = vsub.s32 %v1216, %v1324
        %v1326 = vrot.slane %v1144, %v1325
        %v1327 = vsel %vm1221, %v1326, %v1322
        %v1328 = vlaneseq
        %v1329 = vshrl.u32 %v1328, 7
        %v1330 = vsub.s32 %v1223, %v1329
        %v1331 = vrot.slane %v1146, %v1330
        %v1332 = vsel %vm1228, %v1331, %v1327
        %v1333 = vlaneseq
        %v1334 = vshrl.u32 %v1333, 7
        %v1335 = vsub.s32 %v1230, %v1334
        %v1336 = vrot.slane %v1148, %v1335
        %v1337 = vsel %vm1235, %v1336, %v1332
        %v1338 = vlaneseq
        %v1339 = vshrl.u32 %v1338, 7
        %v1340 = vsub.s32 %v1237, %v1339
        %v1341 = vrot.slane %v1150, %v1340
        %v1342 = vsel %vm1242, %v1341, %v1337
        %v1343 = vlaneseq
        %v1344 = vshrl.u32 %v1343, 7
        %v1345 = vsub.s32 %v1244, %v1344
        %v1346 = vrot.slane %v1152, %v1345
        %v1347 = vsel %vm1249, %v1346, %v1342
        %v1348 = vlaneseq
        %v1349 = vshrl.u32 %v1348, 7
        %v1350 = vsub.s32 %v1251, %v1349
        %v1351 = vrot.slane %v1154, %v1350
        %v1352 = vsel %vm1256, %v1351, %v1347
        %v1353 = vlaneseq
        %v1354 = vshrl.u32 %v1353, 7
        %v1355 = vsub.s32 %v1258, %v1354
        %v1356 = vrot.slane %v1156, %v1355
        %v1357 = vsel %vm1263, %v1356, %v1352
        %v1358 = vlaneseq
        %v1359 = vshrl.u32 %v1358, 7
        %v1360 = vsub.s32 %v1265, %v1359
        %v1361 = vrot.slane %v1158, %v1360
        %v1362 = vsel %vm1270, %v1361, %v1357
        %v1363 = vlaneseq
        %v1364 = vshrl.u32 %v1363, 7
        %v1365 = vsub.s32 %v1272, %v1364
        %v1366 = vrot.slane %v1160, %v1365
        %v1367 = vsel %vm1277, %v1366, %v1362
        %v1368 = vlaneseq
        %v1369 = vshrl.u32 %v1368, 7
        %v1370 = vsub.s32 %v1279, %v1369
        %v1371 = vrot.slane %v1162, %v1370
        %v1372 = vsel %vm1284, %v1371, %v1367
        %v1373 = vlaneseq
        %v1374 = vshrl.u32 %v1373, 7
        %v1375 = vsub.s32 %v1286, %v1374
        %v1376 = vrot.slane %v1164, %v1375
        %v1377 = vsel %vm1291, %v1376, %v1372
        %v1378 = vlaneseq
        %v1379 = vshrl.u32 %v1378, 7
        %v1380 = vsub.s32 %v1293, %v1379
        %v1381 = vrot.slane %v1166, %v1380
        %v1382 = vsel %vm1298, %v1381, %v1377
        %v1383 = vlaneseq
        %v1384 = vshrl.u32 %v1383, 7
        %v1385 = vsub.s32 %v1300, %v1384
        %v1386 = vrot.slane %v1168, %v1385
        %v1387 = vsel %vm1305, %v1386, %v1382
        %v1388 = vlaneseq
        %v1389 = vshrl.u32 %v1388, 7
        %v1390 = vsub.s32 %v1307, %v1389
        %v1391 = vrot.slane %v1170, %v1390
        %v1392 = vsel %vm1312, %v1391, %v1387
        %vm1393 = vcmask 1042434
        %v1394 = vsel %vm1393, %v1313, %v1313
        %vm1395 = vcmask 1043459
        %v1396 = vsel %vm1395, %v1313, %v1394
        %vm1397 = vcmask 1044484
        %v1398 = vsel %vm1397, %v1313, %v1396
        %vm1399 = vcmask 1045509
        %v1400 = vsel %vm1399, %v1313, %v1398
        %vm1401 = vcmask 1046534
        %v1402 = vsel %vm1401, %v1313, %v1400
        %vm1403 = vcmask 1047559
        %v1404 = vsel %vm1403, %v1313, %v1402
        %v1405 = vsel %vm1393, %v1392, %v1392
        %v1406 = vsel %vm1395, %v1392, %v1405
        %v1407 = vsel %vm1397, %v1392, %v1406
        %v1408 = vsel %vm1399, %v1392, %v1407
        %v1409 = vsel %vm1401, %v1392, %v1408
        %v1410 = vsel %vm1403, %v1392, %v1409
        %v1413 = vmul.f32 %v964, %v1404
        %v1414 = vmul.f32 %v969, %v1404
        %v1415 = vmul.f32 %v974, %v1404
        %v1416 = vmul.f32 %v979, %v1404
        %v1417 = vmul.f32 %v984, %v1404
        %v1418 = vmul.f32 %v989, %v1404
        %v1419 = vmul.f32 %v994, %v1404
        %v1420 = vmul.f32 %v999, %v1404
        %v1421 = vmul.f32 %v1069, %v1410
        %v1422 = vmul.f32 %v1074, %v1410
        %v1423 = vmul.f32 %v1079, %v1410
        %v1424 = vmul.f32 %v1084, %v1410
        %v1425 = vmul.f32 %v1089, %v1410
        %v1426 = vmul.f32 %v1094, %v1410
        %v1427 = vmul.f32 %v1099, %v1410
        %v1428 = vmul.f32 %v1104, %v1410
        %1429 = vst [vmem:[%s153] sm:$0xff] %v1413
        %1430 = vst [vmem:[%s153 + $0x8] sm:$0xff] %v1414
        %1431 = vst [vmem:[%s153 + $0x10] sm:$0xff] %v1415
        %1432 = vst [vmem:[%s153 + $0x18] sm:$0xff] %v1416
        %1433 = vst [vmem:[%s153 + $0x20] sm:$0xff] %v1417
        %1434 = vst [vmem:[%s153 + $0x28] sm:$0xff] %v1418
        %1435 = vst [vmem:[%s153 + $0x30] sm:$0xff] %v1419
        %1436 = vst [vmem:[%s153 + $0x38] sm:$0xff] %v1420
        %1437 = vst [vmem:[%s153 + $0x40] sm:$0xff] %v1421
        %1438 = vst [vmem:[%s153 + $0x48] sm:$0xff] %v1422
        %1439 = vst [vmem:[%s153 + $0x50] sm:$0xff] %v1423
        %1440 = vst [vmem:[%s153 + $0x58] sm:$0xff] %v1424
        %1441 = vst [vmem:[%s153 + $0x60] sm:$0xff] %v1425
        %1442 = vst [vmem:[%s153 + $0x68] sm:$0xff] %v1426
        %1443 = vst [vmem:[%s153 + $0x70] sm:$0xff] %v1427
        %1444 = vst [vmem:[%s153 + $0x78] sm:$0xff] %v1428
        %s1445 = sand.u32 %s68, 1
        %s1446 = scalar_lea.sflag [#allocation4], %s1445
        %s1447 = sand.u32 %s68, 1
        %s1448 = smul.addr %s1447, 128
        %s1449 = scalar_lea.vmem [#allocation5], %s1448
        // Predicated region
        $region29: #{tpu_custom_call.1} parent=23 // pred_check
          %p1450 = pneg %p78
        $region30: #{tpu_custom_call.1} parent=23 // pred_check_branch
          %1452 = sbr.rel (%p1450) target = $region32
        $region31: #{tpu_custom_call.1} parent=23 // pred_region
          %s1453 = smul.u32 2, %s23
          %s1455 = ssub.s32 2048, 2048
          %1456 = vsyncadd %s1446, %s1455
          %s1457 = smul.addr %s1453, 8
          %s1458 = smul.addr %s22, 16
          %s1459 = sadd.s32 %s1457, %s1458
          %s1460 = smul.addr %s1459, 128
          %s1461 = scalar_lea.hbm %s1, %s1460
          %s1462 = sshll.u32 %s1449, 4
          %s1463 = int_to_ptr.vmem [resolvable:$true] %s1462
          %1468 = dma.vmem_to_hbm [thread:$0]  %s1463, 2048, %s1461, %s1446, 128, 128, 8
        $region32: #{tpu_custom_call.1} parent=23 // pred_fallthru
          _
      $region24: #{tpu_custom_call.1} parent=5 // pred_fallthru
        _
      %p1469 = scmp.le.s32.totalorder 2, %s13
      // Predicated region
      $region33: #{tpu_custom_call.1} parent=5 // pred_check
        %p1470 = pneg %p1469
      $region34: #{tpu_custom_call.1} parent=5 // pred_check_branch
        %1472 = sbr.rel (%p1470) target = $region36
      $region35: #{tpu_custom_call.1} parent=5 // pred_region
        %s1473 = ssub.s32 %s13, 2
        // Predicated region
        $region37: #{tpu_custom_call.1} parent=35 // pred_check
          %p1474 = pneg %p84
        $region38: #{tpu_custom_call.1} parent=35 // pred_check_branch
          %1476 = sbr.rel (%p1474) target = $region40
        $region39: #{tpu_custom_call.1} parent=35 // pred_region
          %s1477 = sand.u32 %s69, 1
          %s1478 = scalar_lea.sflag [#allocation4], %s1477
          %s1479 = sand.u32 %s69, 1
          %s1480 = smul.addr %s1479, 128
          %s1481 = scalar_lea.vmem [#allocation5], %s1480
          %1482 = dma.done %s1478, 2048
        $region40: #{tpu_custom_call.1} parent=35 // pred_fallthru
          _
      $region36: #{tpu_custom_call.1} parent=5 // pred_fallthru
        _
    $region6: #{tpu_custom_call.1} parent=1 // loop_footer
      %s17 = sadd.s32 1, %s13
    $region7: #{tpu_custom_call.1} parent=1 // loop_footer_branch
      %12 = sbr.rel target = $region3
    $region8: #{tpu_custom_call.1} parent=1 // loop_exit
      _
    %1483 = vsyncpa [#allocation3], 1
    %s1484 = scalar_lea.sflag [#allocation3], 1
    %1485 = vsyncpa %s1484, 1
    %1486 = vsyncpa [#allocation4], 1
    %s1487 = scalar_lea.sflag [#allocation4], 1
    %1488 = vsyncpa %s1487, 1

</llo_original>
